<compile_context>
chip_gen: v5e
topology: v5e:2x2
jax: 0.10.0
libtpu: 0.0.40
codegen_flags: <defaults>
</compile_context>

<pallas_src>
import jax
import jax.numpy as jnp
from jax import lax
from jax.experimental import pallas as pl
from jax.experimental.pallas import tpu as pltpu

LN_EPS = 1e-12


def _round_up(x, m):
    return (x + m - 1) // m * m


def _make_kernel(emit_pre):
    def kernel(x_ref, w_ref, b_ref, res_ref, gamma_ref, beta_ref, out_ref, *rest):
        # Dense: [tm, I] @ [I, H] -> [tm, H] on the MXU, f32 accumulation.
        h = jnp.dot(x_ref[...], w_ref[...], preferred_element_type=jnp.float32)
        h = h + b_ref[...].astype(jnp.float32)        # bias broadcast over rows
        # Dropout is identity in eval mode.
        pre = h + res_ref[...].astype(jnp.float32)    # residual add (f32)
        if emit_pre:
            rest[0][...] = pre.astype(rest[0].dtype)

        # Fused LayerNorm over the hidden (last / lane) axis, all in f32.
        mean = jnp.mean(pre, axis=-1, keepdims=True)
        cent = pre - mean
        var = jnp.mean(cent * cent, axis=-1, keepdims=True)
        inv = lax.rsqrt(var + LN_EPS)
        out = (cent * inv * gamma_ref[...].astype(jnp.float32)
               + beta_ref[...].astype(jnp.float32))
        out_ref[...] = out.astype(out_ref.dtype)

    return kernel


def bert_output_forward(hidden_states, input_tensor, w, b, gamma, beta, *,
                        tm=256, compute_dtype=None, return_pre=True,
                        pre_dtype=None):
    """Fused dense + bias + residual + LayerNorm.

    hidden_states: [B, S, I]   input_tensor: [B, S, H]
    w: [I, H] (transpose of torch Linear weight)   b/gamma/beta: [H]
    compute_dtype: optionally cast activations/weight (e.g. bf16) for the MXU;
                   accumulation and LayerNorm stay f32.
    return_pre:    also return the pre-LayerNorm residual (module semantics).
    """
    B, S, I = hidden_states.shape
    H = input_tensor.shape[-1]
    assert w.shape == (I, H)
    assert H % 128 == 0, "hidden size must be lane-dense (multiple of 128)"

    out_dtype = input_tensor.dtype
    if pre_dtype is None:
        pre_dtype = out_dtype

    if compute_dtype is not None:
        hidden_states = hidden_states.astype(compute_dtype)
        w = w.astype(compute_dtype)

    rows = B * S
    # Sublane granularity: 8 rows for 32-bit, 16 for 16-bit activations.
    sub = 16 if jnp.dtype(hidden_states.dtype).itemsize < 4 else 8
    tm_eff = max(sub, min(_round_up(tm, sub), _round_up(rows, sub)))
    rows_p = _round_up(rows, tm_eff)

    x2 = hidden_states.reshape(rows, I)
    r2 = input_tensor.reshape(rows, H)
    if rows_p != rows:
        pad = rows_p - rows
        x2 = jnp.pad(x2, ((0, pad), (0, 0)))
        r2 = jnp.pad(r2, ((0, pad), (0, 0)))

    b2 = b.reshape(1, H).astype(jnp.float32)
    g2 = gamma.reshape(1, H).astype(jnp.float32)
    bt2 = beta.reshape(1, H).astype(jnp.float32)

    grid = (rows_p // tm_eff,)
    in_specs = [
        pl.BlockSpec((tm_eff, I), lambda i: (i, 0)),   # activation tile
        pl.BlockSpec((I, H), lambda i: (0, 0)),        # full weight, resident
        pl.BlockSpec((1, H), lambda i: (0, 0)),        # bias
        pl.BlockSpec((tm_eff, H), lambda i: (i, 0)),   # residual tile
        pl.BlockSpec((1, H), lambda i: (0, 0)),        # LN gamma
        pl.BlockSpec((1, H), lambda i: (0, 0)),        # LN beta
    ]
    row_out_spec = pl.BlockSpec((tm_eff, H), lambda i: (i, 0))

    if return_pre:
        out_shape = (jax.ShapeDtypeStruct((rows_p, H), out_dtype),
                     jax.ShapeDtypeStruct((rows_p, H), pre_dtype))
        out_specs = [row_out_spec, row_out_spec]
    else:
        out_shape = jax.ShapeDtypeStruct((rows_p, H), out_dtype)
        out_specs = row_out_spec

    result = pl.pallas_call(
        _make_kernel(return_pre),
        out_shape=out_shape,
        grid_spec=pltpu.PrefetchScalarGridSpec(
            num_scalar_prefetch=0,
            grid=grid,
            in_specs=in_specs,
            out_specs=out_specs,
        ),
        compiler_params=pltpu.CompilerParams(
            dimension_semantics=("parallel",),
            vmem_limit_bytes=48 * 1024 * 1024,
        ),
    )(x2, w, b2, r2, g2, bt2)

    if return_pre:
        out, pre = result
        return (out[:rows].reshape(B, S, H), pre[:rows].reshape(B, S, H))
    return result[:rows].reshape(B, S, H)


def reference_forward(hidden_states, input_tensor, w, b, gamma, beta):
    h = jnp.einsum("bsi,ih->bsh", hidden_states.astype(jnp.float32),
                   w.astype(jnp.float32)) + b
    pre = h + input_tensor.astype(jnp.float32)
    mean = jnp.mean(pre, axis=-1, keepdims=True)
    var = jnp.mean((pre - mean) ** 2, axis=-1, keepdims=True)
    out = (pre - mean) * lax.rsqrt(var + LN_EPS) * gamma + beta
    return out, pre


if __name__ == "__main__":
    # Small but layout-realistic config: lane-dense H, I multiples of 128.
    B, S, I, H = 2, 8, 256, 128
    key = jax.random.PRNGKey(0)
    k1, k2, k3, k4 = jax.random.split(key, 4)

    hidden_states = jax.random.normal(k1, (B, S, I), dtype=jnp.float32)
    input_tensor = jax.random.normal(k2, (B, S, H), dtype=jnp.float32)

    # Deterministic parameter init (synthetic, no checkpoint load).
    w = jax.random.normal(k3, (I, H), dtype=jnp.float32) * 0.02   # dense weight [I, H]
    b = jax.random.normal(k4, (H,), dtype=jnp.float32) * 0.02     # dense bias
    gamma = jnp.ones((H,), dtype=jnp.float32)                      # LayerNorm weight
    beta = jnp.zeros((H,), dtype=jnp.float32)                      # LayerNorm bias

    ref_out, ref_pre = reference_forward(hidden_states, input_tensor, w, b, gamma, beta)

    # f32 path (module-exact), tight tolerance.
    out, pre = bert_output_forward(hidden_states, input_tensor, w, b, gamma, beta)
    out, pre = jax.block_until_ready((out, pre))
    assert jnp.allclose(out, ref_out, atol=1e-5, rtol=1e-5)
    assert jnp.allclose(pre, ref_pre, atol=1e-5, rtol=1e-5)

    # bf16 matmul perf path (f32 accumulate + f32 LN), single output, loose check.
    out_bf16 = bert_output_forward(
        hidden_states, input_tensor, w, b, gamma, beta,
        compute_dtype=jnp.bfloat16, return_pre=False)
    out_bf16 = jax.block_until_ready(out_bf16)
    assert jnp.allclose(out_bf16.astype(jnp.float32), ref_out, atol=5e-2, rtol=5e-2)

    print("KERNEL_OK")
</pallas_src>

<mosaic_0001>
module attributes {stable_mosaic.version = 11 : i64} {
  func.func @kernel(%arg0: i32, %arg1: memref<16x256xf32, #tpu.memory_space<vmem>>, %arg2: memref<256x128xf32, #tpu.memory_space<vmem>>, %arg3: memref<1x128xf32, #tpu.memory_space<vmem>>, %arg4: memref<16x128xf32, #tpu.memory_space<vmem>>, %arg5: memref<1x128xf32, #tpu.memory_space<vmem>>, %arg6: memref<1x128xf32, #tpu.memory_space<vmem>>, %arg7: memref<16x128xf32, #tpu.memory_space<vmem>>, %arg8: memref<16x128xf32, #tpu.memory_space<vmem>>) attributes {dimension_semantics = [#tpu.dimension_semantics<parallel>], iteration_bounds = array<i64: 1>, scalar_prefetch = 0 : i64, scratch_operands = 0 : i64, tpu.core_type = #tpu.core_type<tc>, window_params = [{transform_indices = @transform_0, window_bounds = array<i64: 16, 256>}, {pipeline_mode = #tpu.pipeline_mode<synchronous>, transform_indices = @transform_1, window_bounds = array<i64: 256, 128>}, {pipeline_mode = #tpu.pipeline_mode<synchronous>, transform_indices = @transform_2, window_bounds = array<i64: 1, 128>}, {transform_indices = @transform_3, window_bounds = array<i64: 16, 128>}, {pipeline_mode = #tpu.pipeline_mode<synchronous>, transform_indices = @transform_4, window_bounds = array<i64: 1, 128>}, {pipeline_mode = #tpu.pipeline_mode<synchronous>, transform_indices = @transform_5, window_bounds = array<i64: 1, 128>}, {transform_indices = @transform_6, window_bounds = array<i64: 16, 128>}, {transform_indices = @transform_7, window_bounds = array<i64: 16, 128>}]} {
    %c0 = arith.constant 0 : index
    %c0_0 = arith.constant 0 : index
    %0 = vector.load %arg1[%c0, %c0_0] : memref<16x256xf32, #tpu.memory_space<vmem>>, vector<16x256xf32>
    %c0_1 = arith.constant 0 : index
    %c0_2 = arith.constant 0 : index
    %1 = vector.load %arg2[%c0_1, %c0_2] : memref<256x128xf32, #tpu.memory_space<vmem>>, vector<256x128xf32>
    %cst = arith.constant dense<0.000000e+00> : vector<16x128xf32>
    %2 = tpu.matmul %0, %1, %cst {dimension_numbers = #tpu.dot_dimension_numbers<[1], [0], [0], [1], [0, 0, 1, 1], [], []>} : vector<16x256xf32>, vector<256x128xf32>, vector<16x128xf32> -> vector<16x128xf32>
    %c0_3 = arith.constant 0 : index
    %c0_4 = arith.constant 0 : index
    %3 = vector.load %arg3[%c0_3, %c0_4] : memref<1x128xf32, #tpu.memory_space<vmem>>, vector<1x128xf32>
    %4 = vector.broadcast %3 : vector<1x128xf32> to vector<16x128xf32>
    %5 = arith.addf %2, %4 : vector<16x128xf32>
    %c0_5 = arith.constant 0 : index
    %c0_6 = arith.constant 0 : index
    %6 = vector.load %arg4[%c0_5, %c0_6] : memref<16x128xf32, #tpu.memory_space<vmem>>, vector<16x128xf32>
    %7 = arith.addf %5, %6 : vector<16x128xf32>
    %c0_7 = arith.constant 0 : index
    %c0_8 = arith.constant 0 : index
    %8 = vector.load %arg8[%c0_7, %c0_8] : memref<16x128xf32, #tpu.memory_space<vmem>>, vector<16x128xf32>
    tpu.vector_store %arg8[%c0_7, %c0_8], %7 {strides = array<i32>} : memref<16x128xf32, #tpu.memory_space<vmem>>, vector<16x128xf32>,
    %cst_9 = arith.constant dense<0.000000e+00> : vector<16xf32>
    %9 = vector.multi_reduction <add>, %7, %cst_9 [1] : vector<16x128xf32> to vector<16xf32>
    %10 = vector.shape_cast %9 : vector<16xf32> to vector<16x1xf32>
    %cst_10 = arith.constant 1.280000e+02 : f32
    %11 = vector.broadcast %cst_10 : f32 to vector<16x1xf32>
    %12 = arith.divf %10, %11 : vector<16x1xf32>
    %13 = vector.broadcast %12 : vector<16x1xf32> to vector<16x128xf32>
    %14 = arith.subf %7, %13 : vector<16x128xf32>
    %15 = arith.mulf %14, %14 : vector<16x128xf32>
    %cst_11 = arith.constant dense<0.000000e+00> : vector<16xf32>
    %16 = vector.multi_reduction <add>, %15, %cst_11 [1] : vector<16x128xf32> to vector<16xf32>
    %17 = vector.shape_cast %16 : vector<16xf32> to vector<16x1xf32>
    %cst_12 = arith.constant 1.280000e+02 : f32
    %18 = vector.broadcast %cst_12 : f32 to vector<16x1xf32>
    %19 = arith.divf %17, %18 : vector<16x1xf32>
    %cst_13 = arith.constant 9.99999996E-13 : f32
    %20 = vector.broadcast %cst_13 : f32 to vector<16x1xf32>
    %21 = arith.addf %19, %20 : vector<16x1xf32>
    %22 = math.rsqrt %21 : vector<16x1xf32>
    %23 = vector.broadcast %22 : vector<16x1xf32> to vector<16x128xf32>
    %24 = arith.mulf %14, %23 : vector<16x128xf32>
    %c0_14 = arith.constant 0 : index
    %c0_15 = arith.constant 0 : index
    %25 = vector.load %arg5[%c0_14, %c0_15] : memref<1x128xf32, #tpu.memory_space<vmem>>, vector<1x128xf32>
    %26 = vector.broadcast %25 : vector<1x128xf32> to vector<16x128xf32>
    %27 = arith.mulf %24, %26 : vector<16x128xf32>
    %c0_16 = arith.constant 0 : index
    %c0_17 = arith.constant 0 : index
    %28 = vector.load %arg6[%c0_16, %c0_17] : memref<1x128xf32, #tpu.memory_space<vmem>>, vector<1x128xf32>
    %29 = vector.broadcast %28 : vector<1x128xf32> to vector<16x128xf32>
    %30 = arith.addf %27, %29 : vector<16x128xf32>
    %c0_18 = arith.constant 0 : index
    %c0_19 = arith.constant 0 : index
    %31 = vector.load %arg7[%c0_18, %c0_19] : memref<16x128xf32, #tpu.memory_space<vmem>>, vector<16x128xf32>
    tpu.vector_store %arg7[%c0_18, %c0_19], %30 {strides = array<i32>} : memref<16x128xf32, #tpu.memory_space<vmem>>, vector<16x128xf32>,
    return
  }
  func.func @transform_0(%arg0: i32) -> (i32, i32) {
    %c0_i32 = arith.constant 0 : i32
    %c0_i32_0 = arith.constant 0 : i32
    return %arg0, %c0_i32 : i32, i32
  }
  func.func @transform_1(%arg0: i32) -> (i32, i32) {
    %c0_i32 = arith.constant 0 : i32
    %c0_i32_0 = arith.constant 0 : i32
    %c0_i32_1 = arith.constant 0 : i32
    return %c0_i32, %c0_i32_0 : i32, i32
  }
  func.func @transform_2(%arg0: i32) -> (i32, i32) {
    %c0_i32 = arith.constant 0 : i32
    %c0_i32_0 = arith.constant 0 : i32
    %c0_i32_1 = arith.constant 0 : i32
    return %c0_i32, %c0_i32_0 : i32, i32
  }
  func.func @transform_3(%arg0: i32) -> (i32, i32) {
    %c0_i32 = arith.constant 0 : i32
    %c0_i32_0 = arith.constant 0 : i32
    return %arg0, %c0_i32 : i32, i32
  }
  func.func @transform_4(%arg0: i32) -> (i32, i32) {
    %c0_i32 = arith.constant 0 : i32
    %c0_i32_0 = arith.constant 0 : i32
    %c0_i32_1 = arith.constant 0 : i32
    return %c0_i32, %c0_i32_0 : i32, i32
  }
  func.func @transform_5(%arg0: i32) -> (i32, i32) {
    %c0_i32 = arith.constant 0 : i32
    %c0_i32_0 = arith.constant 0 : i32
    %c0_i32_1 = arith.constant 0 : i32
    return %c0_i32, %c0_i32_0 : i32, i32
  }
  func.func @transform_6(%arg0: i32) -> (i32, i32) {
    %c0_i32 = arith.constant 0 : i32
    %c0_i32_0 = arith.constant 0 : i32
    return %arg0, %c0_i32 : i32, i32
  }
  func.func @transform_7(%arg0: i32) -> (i32, i32) {
    %c0_i32 = arith.constant 0 : i32
    %c0_i32_0 = arith.constant 0 : i32
    return %arg0, %c0_i32 : i32, i32
  }
}

</mosaic_0001>

<llo_original>
// kernel: tpu_custom_call.1
$region0: #{tpu_custom_call.1}
  #allocation0 [shape = 'u32[]', space=smem, size = 0x4, offset = 0x4, fixed_abs, tag = 'smem constant byte address 0x4 - core index']
  #allocation1 [shape = 'u32[72,128]{1,0:T(1,128)}', space=vmem, size = 0x9000, scoped, tag = 'internal scratch']
  %s0 = inlined_call_operand.hbm [shape: f32[16,256], index: 0, kind: input, shape index: {}]
  %s1 = inlined_call_operand.hbm [shape: f32[256,128], index: 1, kind: input, shape index: {}]
  %s2 = inlined_call_operand.vmem [shape: f32[1,128], index: 2, kind: input, shape index: {}]
  %s3 = inlined_call_operand.hbm [shape: f32[16,128], index: 3, kind: input, shape index: {}]
  %s4 = inlined_call_operand.vmem [shape: f32[1,128], index: 4, kind: input, shape index: {}]
  %s5 = inlined_call_operand.vmem [shape: f32[1,128], index: 5, kind: input, shape index: {}]
  %s6 = inlined_call_operand.hbm [shape: f32[16,128], index: 6, kind: output, shape index: {0}]
  %s7 = inlined_call_operand.hbm [shape: f32[16,128], index: 7, kind: output, shape index: {1}]
  %8 = xla_tuple %s6, %s7
  %s9 = sld [smem:[#allocation0]]
  $region54: #{tpu_custom_call.1} parent=0
    _
  %s11 = ssub.s32 1, %s9
  %s12 = scalar_select 0, %s11, %s9
  $region1: #{tpu_custom_call.1} parent=0
    #allocation2 [shape = 'u8[16384]{0}', space=vmem, size = 0x4000, scoped, tag = 'input window, operand 0, single buffered']
    #allocation3 [shape = 's32[1]{0}', space=sflag, size = 0x4, scoped, tag = 'scoped memory for tpu_custom_call.1']
    #allocation4 [shape = 's32[1]{0}', space=sflag, size = 0x4, scoped, tag = 'scoped memory for tpu_custom_call.1']
    #allocation5 [shape = 'u8[131072]{0}', space=vmem, size = 0x20000, scoped, tag = 'input window, operand 1, single buffered']
    #allocation6 [shape = 's32[1]{0}', space=sflag, size = 0x4, scoped, tag = 'scoped memory for tpu_custom_call.1']
    #allocation7 [shape = 'u8[8192]{0}', space=vmem, size = 0x2000, scoped, tag = 'input window, operand 3, single buffered']
    #allocation8 [shape = 'u8[8192]{0}', space=vmem, size = 0x2000, scoped, tag = 'output window, operand 0, single buffered']
    #allocation9 [shape = 'u8[8192]{0}', space=vmem, size = 0x2000, scoped, tag = 'output window, operand 1, single buffered']
    #allocation10 [shape = 's32[1]{0}', space=sflag, size = 0x4, scoped, tag = 'scoped memory for tpu_custom_call.1']
    %13 = vsyncpa [#allocation3], 0
    %14 = vsyncpa [#allocation6], 0
    %15 = vsyncpa [#allocation4], 0
    %16 = vsyncpa [#allocation10], 0
    // Predicated region
    $region2: #{tpu_custom_call.1} parent=1 // pred_check
      _
    $region3: #{tpu_custom_call.1} parent=1 // pred_check_branch
      %18 = sbr.rel (0) target = $region5
    $region4: #{tpu_custom_call.1} parent=1 // pred_region
      %20 = vsyncadd [#allocation3], 0
      %s21 = sshll.u32 %s0, 4
      %s22 = int_to_ptr.hbm [resolvable:$true] %s21
      %s23 = sshll.u32 [#allocation2], 4
      %s24 = int_to_ptr.vmem [resolvable:$true] %s23
      %29 = dma.hbm_to_vmem [thread:$0]  %s22, 512, %s24, [#allocation3], 256, 256, 16
    $region5: #{tpu_custom_call.1} parent=1 // pred_fallthru
      _
    // Predicated region
    $region6: #{tpu_custom_call.1} parent=1 // pred_check
      _
    $region7: #{tpu_custom_call.1} parent=1 // pred_check_branch
      %31 = sbr.rel (0) target = $region9
    $region8: #{tpu_custom_call.1} parent=1 // pred_region
      %33 = vsyncadd [#allocation6], 0
      %s34 = sshll.u32 %s1, 4
      %s35 = int_to_ptr.hbm [resolvable:$true] %s34
      %s36 = sshll.u32 [#allocation5], 4
      %s37 = int_to_ptr.vmem [resolvable:$true] %s36
      %42 = dma.hbm_to_vmem [thread:$0]  %s35, 4096, %s37, [#allocation6], 128, 128, 8
    $region9: #{tpu_custom_call.1} parent=1 // pred_fallthru
      _
    // Predicated region
    $region10: #{tpu_custom_call.1} parent=1 // pred_check
      _
    $region11: #{tpu_custom_call.1} parent=1 // pred_check_branch
      %44 = sbr.rel (0) target = $region13
    $region12: #{tpu_custom_call.1} parent=1 // pred_region
      _
    $region13: #{tpu_custom_call.1} parent=1 // pred_fallthru
      _
    // Predicated region
    $region14: #{tpu_custom_call.1} parent=1 // pred_check
      _
    $region15: #{tpu_custom_call.1} parent=1 // pred_check_branch
      %46 = sbr.rel (0) target = $region17
    $region16: #{tpu_custom_call.1} parent=1 // pred_region
      %48 = vsyncadd [#allocation6], 0
      %s49 = sshll.u32 %s3, 4
      %s50 = int_to_ptr.hbm [resolvable:$true] %s49
      %s51 = sshll.u32 [#allocation7], 4
      %s52 = int_to_ptr.vmem [resolvable:$true] %s51
      %57 = dma.hbm_to_vmem [thread:$0]  %s50, 256, %s52, [#allocation6], 128, 128, 8
    $region17: #{tpu_custom_call.1} parent=1 // pred_fallthru
      _
    // Predicated region
    $region18: #{tpu_custom_call.1} parent=1 // pred_check
      _
    $region19: #{tpu_custom_call.1} parent=1 // pred_check_branch
      %59 = sbr.rel (0) target = $region21
    $region20: #{tpu_custom_call.1} parent=1 // pred_region
      _
    $region21: #{tpu_custom_call.1} parent=1 // pred_fallthru
      _
    // Predicated region
    $region22: #{tpu_custom_call.1} parent=1 // pred_check
      _
    $region23: #{tpu_custom_call.1} parent=1 // pred_check_branch
      %61 = sbr.rel (0) target = $region25
    $region24: #{tpu_custom_call.1} parent=1 // pred_region
      _
    $region25: #{tpu_custom_call.1} parent=1 // pred_fallthru
      _
    // Predicated region
    $region26: #{tpu_custom_call.1} parent=1 // pred_check
      _
    $region27: #{tpu_custom_call.1} parent=1 // pred_check_branch
      %63 = sbr.rel (0) target = $region29
    $region28: #{tpu_custom_call.1} parent=1 // pred_region
      %65 = dma.done [#allocation3], 512
    $region29: #{tpu_custom_call.1} parent=1 // pred_fallthru
      _
    // Predicated region
    $region30: #{tpu_custom_call.1} parent=1 // pred_check
      _
    $region31: #{tpu_custom_call.1} parent=1 // pred_check_branch
      %67 = sbr.rel (0) target = $region33
    $region32: #{tpu_custom_call.1} parent=1 // pred_region
      %69 = dma.done [#allocation6], 4096
    $region33: #{tpu_custom_call.1} parent=1 // pred_fallthru
      _
    // Predicated region
    $region34: #{tpu_custom_call.1} parent=1 // pred_check
      _
    $region35: #{tpu_custom_call.1} parent=1 // pred_check_branch
      %71 = sbr.rel (0) target = $region37
    $region36: #{tpu_custom_call.1} parent=1 // pred_region
      %73 = dma.done [#allocation6], 256
    $region37: #{tpu_custom_call.1} parent=1 // pred_fallthru
      _
    %v74 = vld [vmem:[#allocation2] sm:$0xff]
    %v75 = vld [vmem:[#allocation2 + $0x8] sm:$0xff]
    %v76 = vld [vmem:[#allocation2 + $0x10] sm:$0xff]
    %v77 = vld [vmem:[#allocation2 + $0x18] sm:$0xff]
    %v78 = vld [vmem:[#allocation5] sm:$0xff]
    %v79 = vld [vmem:[#allocation5 + $0x8] sm:$0xff]
    %v80 = vld [vmem:[#allocation5 + $0x10] sm:$0xff]
    %v81 = vld [vmem:[#allocation5 + $0x18] sm:$0xff]
    %v82 = vld [vmem:[#allocation5 + $0x20] sm:$0xff]
    %v83 = vld [vmem:[#allocation5 + $0x28] sm:$0xff]
    %v84 = vld [vmem:[#allocation5 + $0x30] sm:$0xff]
    %v85 = vld [vmem:[#allocation5 + $0x38] sm:$0xff]
    %v86 = vld [vmem:[#allocation5 + $0x40] sm:$0xff]
    %v87 = vld [vmem:[#allocation5 + $0x48] sm:$0xff]
    %v88 = vld [vmem:[#allocation5 + $0x50] sm:$0xff]
    %v89 = vld [vmem:[#allocation5 + $0x58] sm:$0xff]
    %v90 = vld [vmem:[#allocation5 + $0x60] sm:$0xff]
    %v91 = vld [vmem:[#allocation5 + $0x68] sm:$0xff]
    %v92 = vld [vmem:[#allocation5 + $0x70] sm:$0xff]
    %v93 = vld [vmem:[#allocation5 + $0x78] sm:$0xff]
    %v94 = vld [vmem:[#allocation5 + $0x80] sm:$0xff]
    %v95 = vld [vmem:[#allocation5 + $0x88] sm:$0xff]
    %v96 = vld [vmem:[#allocation5 + $0x90] sm:$0xff]
    %v97 = vld [vmem:[#allocation5 + $0x98] sm:$0xff]
    %v98 = vld [vmem:[#allocation5 + $0xa0] sm:$0xff]
    %v99 = vld [vmem:[#allocation5 + $0xa8] sm:$0xff]
    %v100 = vld [vmem:[#allocation5 + $0xb0] sm:$0xff]
    %v101 = vld [vmem:[#allocation5 + $0xb8] sm:$0xff]
    %v102 = vld [vmem:[#allocation5 + $0xc0] sm:$0xff]
    %v103 = vld [vmem:[#allocation5 + $0xc8] sm:$0xff]
    %v104 = vld [vmem:[#allocation5 + $0xd0] sm:$0xff]
    %v105 = vld [vmem:[#allocation5 + $0xd8] sm:$0xff]
    %v106 = vld [vmem:[#allocation5 + $0xe0] sm:$0xff]
    %v107 = vld [vmem:[#allocation5 + $0xe8] sm:$0xff]
    %v108 = vld [vmem:[#allocation5 + $0xf0] sm:$0xff]
    %v109 = vld [vmem:[#allocation5 + $0xf8] sm:$0xff]
    %v110 = vld [vmem:[%s2] sm:$0x1]
    %v112 = vperm.slane %v110, 0
    %114 = vmatpush.msra.mxu0 %v93
    %115 = vmatpush.msra.mxu0 %v92
    %116 = vmatpush.msra.mxu0 %v91
    %117 = vmatpush.msra.mxu0 %v90
    %118 = vmatpush.msra.mxu0 %v89
    %119 = vmatpush.msra.mxu0 %v88
    %120 = vmatpush.msra.mxu0 %v87
    %121 = vmatpush.msra.mxu0 %v86
    %122 = vmatpush.msra.mxu0 %v85
    %123 = vmatpush.msra.mxu0 %v84
    %124 = vmatpush.msra.mxu0 %v83
    %125 = vmatpush.msra.mxu0 %v82
    %126 = vmatpush.msra.mxu0 %v81
    %127 = vmatpush.msra.mxu0 %v80
    %128 = vmatpush.msra.mxu0 %v79
    %129 = vmatpush.msra.mxu0 %v78
    %130 = vmatmul.f32.gmra.mxu0 %v74
    %v131 = vpop.f32.mrf.mxu0
    %v132 = vadd.f32 %v112, %v131
    %133 = vmatmul.f32.gmra.mxu0 %v76
    %v134 = vpop.f32.mrf.mxu0
    %v135 = vadd.f32 %v112, %v134
    %136 = vdwg.mxu0
    %137 = vmatpush.msra.mxu0 %v109
    %138 = vmatpush.msra.mxu0 %v108
    %139 = vmatpush.msra.mxu0 %v107
    %140 = vmatpush.msra.mxu0 %v106
    %141 = vmatpush.msra.mxu0 %v105
    %142 = vmatpush.msra.mxu0 %v104
    %143 = vmatpush.msra.mxu0 %v103
    %144 = vmatpush.msra.mxu0 %v102
    %145 = vmatpush.msra.mxu0 %v101
    %146 = vmatpush.msra.mxu0 %v100
    %147 = vmatpush.msra.mxu0 %v99
    %148 = vmatpush.msra.mxu0 %v98
    %149 = vmatpush.msra.mxu0 %v97
    %150 = vmatpush.msra.mxu0 %v96
    %151 = vmatpush.msra.mxu0 %v95
    %152 = vmatpush.msra.mxu0 %v94
    %153 = vmatmul.f32.gmra.mxu0 %v75
    %v154 = vpop.f32.mrf.mxu0
    %v155 = vadd.f32 %v132, %v154
    %156 = vmatmul.f32.gmra.mxu0 %v77
    %v157 = vpop.f32.mrf.mxu0
    %v158 = vadd.f32 %v135, %v157
    %159 = vdwg.mxu0
    %v160 = vld [vmem:[#allocation7] sm:$0xff]
    %v161 = vld [vmem:[#allocation7 + $0x8] sm:$0xff]
    %v162 = vadd.f32 %v155, %v160
    %v163 = vadd.f32 %v158, %v161
    %164 = vst [vmem:[#allocation9] sm:$0xff] %v162
    %165 = vst [vmem:[#allocation9 + $0x8] sm:$0xff] %v163
    %166 = vadd.xlane.f32.xlu0 %v162
    %v167 = vpop.xlane.xlu0 %166
    %168 = vadd.xlane.f32.xlu0 %v163
    %v169 = vpop.xlane.xlu0 %168
    %v170 = vrcp.pop 128.0
    %v171 = vmul.f32 128.0, %v170
    %v172 = vsub.f32 1.0, %v171
    %v173 = vmul.f32 %v170, %v172
    %v174 = vadd.f32 %v170, %v173
    %vm175 = vweird.f32 %v170
    %v176 = vsel %vm175, %v170, %v174
    %v177 = vmul.f32 %v167, %v176
    %v178 = vmul.f32 %v169, %v176
    %v179 = vsub.f32 %v162, %v177
    %v180 = vsub.f32 %v163, %v178
    %v181 = vmul.f32 %v179, %v179
    %v182 = vmul.f32 %v180, %v180
    %183 = vadd.xlane.f32.xlu0 %v181
    %v184 = vpop.xlane.xlu0 %183
    %185 = vadd.xlane.f32.xlu0 %v182
    %v186 = vpop.xlane.xlu0 %185
    %v187 = vmul.f32 %v184, %v176
    %v188 = vmul.f32 %v186, %v176
    %v189 = vadd.f32 %v187, 1e-12
    %v190 = vadd.f32 %v188, 1e-12
    %v191 = vrsqrt.pop %v189
    %v192 = vmul.f32 %v191, %v189
    %v193 = vmul.f32 %v192, %v191
    %v194 = vmul.f32 0.5, %v193
    %v195 = vsub.f32 1.5, %v194
    %v196 = vmul.f32 %v191, %v195
    %vm197 = vweird.f32 %v189
    %vm198 = vweird.f32 %v191
    %vm199 = vmor %vm197, %vm198
    %v200 = vsel %vm199, %v191, %v196
    %v201 = vrsqrt.pop %v190
    %v202 = vmul.f32 %v201, %v190
    %v203 = vmul.f32 %v202, %v201
    %v204 = vmul.f32 0.5, %v203
    %v205 = vsub.f32 1.5, %v204
    %v206 = vmul.f32 %v201, %v205
    %vm207 = vweird.f32 %v190
    %vm208 = vweird.f32 %v201
    %vm209 = vmor %vm207, %vm208
    %v210 = vsel %vm209, %v201, %v206
    %v211 = vmul.f32 %v179, %v200
    %v212 = vmul.f32 %v180, %v210
    %v213 = vld [vmem:[%s4] sm:$0x1]
    %v215 = vperm.slane %v213, 0
    %v217 = vmul.f32 %v211, %v215
    %v218 = vmul.f32 %v212, %v215
    %v219 = vld [vmem:[%s5] sm:$0x1]
    %v221 = vperm.slane %v219, 0
    %v223 = vadd.f32 %v217, %v221
    %v224 = vadd.f32 %v218, %v221
    %225 = vst [vmem:[#allocation8] sm:$0xff] %v223
    %226 = vst [vmem:[#allocation8 + $0x8] sm:$0xff] %v224
    // Predicated region
    $region38: #{tpu_custom_call.1} parent=1 // pred_check
      _
    $region39: #{tpu_custom_call.1} parent=1 // pred_check_branch
      %228 = sbr.rel (0) target = $region41
    $region40: #{tpu_custom_call.1} parent=1 // pred_region
      %230 = vsyncadd [#allocation4], 0
      %s231 = sshll.u32 [#allocation8], 4
      %s232 = int_to_ptr.vmem [resolvable:$true] %s231
      %s233 = sshll.u32 %s6, 4
      %s234 = int_to_ptr.hbm [resolvable:$true] %s233
      %239 = dma.vmem_to_hbm [thread:$0]  %s232, 256, %s234, [#allocation4], 128, 128, 8
    $region41: #{tpu_custom_call.1} parent=1 // pred_fallthru
      _
    // Predicated region
    $region42: #{tpu_custom_call.1} parent=1 // pred_check
      _
    $region43: #{tpu_custom_call.1} parent=1 // pred_check_branch
      %241 = sbr.rel (0) target = $region45
    $region44: #{tpu_custom_call.1} parent=1 // pred_region
      %243 = vsyncadd [#allocation10], 0
      %s244 = sshll.u32 [#allocation9], 4
      %s245 = int_to_ptr.vmem [resolvable:$true] %s244
      %s246 = sshll.u32 %s7, 4
      %s247 = int_to_ptr.hbm [resolvable:$true] %s246
      %252 = dma.vmem_to_hbm [thread:$0]  %s245, 256, %s247, [#allocation10], 128, 128, 8
    $region45: #{tpu_custom_call.1} parent=1 // pred_fallthru
      _
    // Predicated region
    $region46: #{tpu_custom_call.1} parent=1 // pred_check
      _
    $region47: #{tpu_custom_call.1} parent=1 // pred_check_branch
      %254 = sbr.rel (0) target = $region49
    $region48: #{tpu_custom_call.1} parent=1 // pred_region
      %256 = dma.done [#allocation4], 256
    $region49: #{tpu_custom_call.1} parent=1 // pred_fallthru
      _
    // Predicated region
    $region50: #{tpu_custom_call.1} parent=1 // pred_check
      _
    $region51: #{tpu_custom_call.1} parent=1 // pred_check_branch
      %258 = sbr.rel (0) target = $region53
    $region52: #{tpu_custom_call.1} parent=1 // pred_region
      %260 = dma.done [#allocation10], 256
    $region53: #{tpu_custom_call.1} parent=1 // pred_fallthru
      _
    %261 = vsyncpa [#allocation3], 1
    %262 = vsyncpa [#allocation6], 1
    %263 = vsyncpa [#allocation4], 1
    %264 = vsyncpa [#allocation10], 1

</llo_original>
